<compile_context>
chip_gen: v5e
topology: v5e:2x2
jax: 0.10.0
libtpu: 0.0.40
codegen_flags: <defaults>
</compile_context>

<pallas_src>
import functools

import jax
import jax.numpy as jnp
from jax.experimental import pallas as pl
from jax.experimental.pallas import tpu as pltpu

PAD_ID = 1
EPS = 1e-5
NEG_INF = -1e9
# Conservative scoped-VMEM budget: below physical on v7x (64 MiB) and v5e/v6e.
VMEM_LIMIT = 48 * 1024 * 1024


def _pick_tile(dim, preferred, align):
    """Largest legal tile <= preferred: full dim if small, else an align-multiple divisor."""
    if dim <= preferred:
        return dim
    t = (preferred // align) * align
    while t >= align:
        if dim % t == 0:
            return t
        t -= align
    return dim


# --------------------------- tiled matmul kernels ----------------------------

def _matmul_kernel(x_ref, w_ref, b_ref, o_ref, acc_ref, *, activation):
    @pl.when(pl.program_id(2) == 0)
    def _():
        acc_ref[...] = jnp.zeros_like(acc_ref)

    acc_ref[...] += jnp.dot(x_ref[...].astype(jnp.bfloat16),
                            w_ref[...].astype(jnp.bfloat16),
                            preferred_element_type=jnp.float32)

    @pl.when(pl.program_id(2) == pl.num_programs(2) - 1)
    def _():
        y = acc_ref[...] + b_ref[...]
        if activation == "gelu":
            y = jax.nn.gelu(y, approximate=True)
        o_ref[...] = y


def linear(x, w_t, b, activation=None, tm=256, tn=512, tk=512):
    """x: [M, K] f32, w_t: [K, N] (pre-transposed), b: [N] -> [M, N] f32."""
    M, K = x.shape
    N = w_t.shape[1]
    tm = _pick_tile(M, tm, 8)
    tn = _pick_tile(N, tn, 128)
    tk = _pick_tile(K, tk, 128)
    grid = (M // tm, N // tn, K // tk)
    return pl.pallas_call(
        functools.partial(_matmul_kernel, activation=activation),
        out_shape=jax.ShapeDtypeStruct((M, N), jnp.float32),
        grid=grid,
        in_specs=[
            pl.BlockSpec((tm, tk), lambda i, j, k: (i, k)),
            pl.BlockSpec((tk, tn), lambda i, j, k: (k, j)),
            pl.BlockSpec((1, tn), lambda i, j, k: (0, j)),
        ],
        out_specs=pl.BlockSpec((tm, tn), lambda i, j, k: (i, j)),
        scratch_shapes=[pltpu.VMEM((tm, tn), jnp.float32)],
        compiler_params=pltpu.CompilerParams(
            dimension_semantics=("parallel", "parallel", "arbitrary"),
            vmem_limit_bytes=VMEM_LIMIT),
    )(x, w_t, b.reshape(1, N))


def _matmul_add_ln_kernel(x_ref, w_ref, b_ref, r_ref, g_ref, bb_ref, o_ref, acc_ref):
    @pl.when(pl.program_id(1) == 0)
    def _():
        acc_ref[...] = jnp.zeros_like(acc_ref)

    acc_ref[...] += jnp.dot(x_ref[...].astype(jnp.bfloat16),
                            w_ref[...].astype(jnp.bfloat16),
                            preferred_element_type=jnp.float32)

    @pl.when(pl.program_id(1) == pl.num_programs(1) - 1)
    def _():
        y = acc_ref[...] + b_ref[...] + r_ref[...]
        mu = jnp.mean(y, axis=-1, keepdims=True)
        var = jnp.mean(jnp.square(y - mu), axis=-1, keepdims=True)
        o_ref[...] = (y - mu) * jax.lax.rsqrt(var + EPS) * g_ref[...] + bb_ref[...]


def linear_add_layernorm(x, w_t, b, residual, gamma, beta, tm=256, tk=512):
    """LayerNorm(x @ w_t + b + residual); the LN reduces over the full N axis."""
    M, K = x.shape
    N = w_t.shape[1]
    tm = _pick_tile(M, tm, 8)
    tk = _pick_tile(K, tk, 128)
    grid = (M // tm, K // tk)
    return pl.pallas_call(
        _matmul_add_ln_kernel,
        out_shape=jax.ShapeDtypeStruct((M, N), jnp.float32),
        grid=grid,
        in_specs=[
            pl.BlockSpec((tm, tk), lambda i, k: (i, k)),
            pl.BlockSpec((tk, N), lambda i, k: (k, 0)),
            pl.BlockSpec((1, N), lambda i, k: (0, 0)),
            pl.BlockSpec((tm, N), lambda i, k: (i, 0)),
            pl.BlockSpec((1, N), lambda i, k: (0, 0)),
            pl.BlockSpec((1, N), lambda i, k: (0, 0)),
        ],
        out_specs=pl.BlockSpec((tm, N), lambda i, k: (i, 0)),
        scratch_shapes=[pltpu.VMEM((tm, N), jnp.float32)],
        compiler_params=pltpu.CompilerParams(
            dimension_semantics=("parallel", "arbitrary"),
            vmem_limit_bytes=VMEM_LIMIT),
    )(x, w_t, b.reshape(1, N), residual, gamma.reshape(1, N), beta.reshape(1, N))


# ------------------------------ LayerNorm-only --------------------------------

def _ln_kernel(x_ref, g_ref, b_ref, o_ref):
    x = x_ref[...]
    mu = jnp.mean(x, axis=-1, keepdims=True)
    var = jnp.mean(jnp.square(x - mu), axis=-1, keepdims=True)
    o_ref[...] = (x - mu) * jax.lax.rsqrt(var + EPS) * g_ref[...] + b_ref[...]


def layernorm(x, gamma, beta, tm=512):
    M, H = x.shape
    tm = _pick_tile(M, tm, 8)
    return pl.pallas_call(
        _ln_kernel,
        out_shape=jax.ShapeDtypeStruct((M, H), jnp.float32),
        grid=(M // tm,),
        in_specs=[pl.BlockSpec((tm, H), lambda i: (i, 0)),
                  pl.BlockSpec((1, H), lambda i: (0, 0)),
                  pl.BlockSpec((1, H), lambda i: (0, 0))],
        out_specs=pl.BlockSpec((tm, H), lambda i: (i, 0)),
        compiler_params=pltpu.CompilerParams(dimension_semantics=("parallel",)),
    )(x, gamma.reshape(1, H), beta.reshape(1, H))


# -------------------------------- attention -----------------------------------

def _attn_kernel(qkv_ref, mrow_ref, mcol_ref, o_ref, *, n_heads, scale):
    qkv = qkv_ref[0]                       # [S, 3H]
    m_row = mrow_ref[0]                    # [1, S]  (key mask, broadcast over rows)
    m_col = mcol_ref[0]                    # [S, 1]  (query mask, broadcast over cols)
    H = qkv.shape[1] // 3
    Dh = H // n_heads

    # additive bias (1 - m_i * m_j) * NEG_INF, built in-kernel from O(S) masks
    bias = (1.0 - m_col * m_row) * NEG_INF  # [S, S]

    outs = []
    for h in range(n_heads):
        q = (qkv[:, h * Dh:(h + 1) * Dh] * scale).astype(jnp.bfloat16)      # fold 1/sqrt(Dh)
        k = qkv[:, H + h * Dh:H + (h + 1) * Dh].astype(jnp.bfloat16)
        v = qkv[:, 2 * H + h * Dh:2 * H + (h + 1) * Dh].astype(jnp.bfloat16)
        s = jax.lax.dot_general(q, k, (((1,), (1,)), ((), ())),
                                preferred_element_type=jnp.float32) + bias
        s = s - jnp.max(s, axis=-1, keepdims=True)
        p = jnp.exp(s)
        p = p * pl.reciprocal(jnp.sum(p, axis=-1, keepdims=True), approx=True)
        outs.append(jnp.dot(p.astype(jnp.bfloat16), v,
                            preferred_element_type=jnp.float32))
    # lane-dense store: heads concatenated along the last axis -> [S, H]
    o_ref[0] = jnp.concatenate(outs, axis=-1)


def attention(qkv, mask_f, n_heads):
    """qkv: [B, S, 3H]; mask_f: [B, S] -> [B, S, H] (heads concatenated)."""
    B, S, H3 = qkv.shape
    H = H3 // 3
    Dh = H // n_heads
    scale = 1.0 / (Dh ** 0.5)
    mask_row = mask_f.reshape(B, 1, S)
    mask_col = mask_f.reshape(B, S, 1)
    # TODO(synk): for long sequences switch to a flash-style KV-tiled grid axis
    #             (online softmax) instead of materializing [S, S] scores.
    return pl.pallas_call(
        functools.partial(_attn_kernel, n_heads=n_heads, scale=scale),
        out_shape=jax.ShapeDtypeStruct((B, S, H), jnp.float32),
        grid=(B,),
        in_specs=[pl.BlockSpec((1, S, H3), lambda b: (b, 0, 0)),
                  pl.BlockSpec((1, 1, S), lambda b: (b, 0, 0)),
                  pl.BlockSpec((1, S, 1), lambda b: (b, 0, 0))],
        out_specs=pl.BlockSpec((1, S, H), lambda b: (b, 0, 0)),
        compiler_params=pltpu.CompilerParams(dimension_semantics=("parallel",)),
    )(qkv, mask_row, mask_col)


# ------------------------------ masked mean pool -------------------------------

def _pool_kernel(x_ref, m_ref, o_ref):
    x = x_ref[0]                                   # [S, H]
    m = m_ref[0]                                   # [1, S]
    num = jnp.dot(m, x, preferred_element_type=jnp.float32)   # [1, H] masked sum
    den = jnp.sum(m, axis=-1, keepdims=True)                  # [1, 1]
    o_ref[0] = num * pl.reciprocal(den, approx=True)


def masked_mean_pool(x, mask_f):
    B, S, H = x.shape
    out = pl.pallas_call(
        _pool_kernel,
        out_shape=jax.ShapeDtypeStruct((B, 1, H), jnp.float32),
        grid=(B,),
        in_specs=[pl.BlockSpec((1, S, H), lambda b: (b, 0, 0)),
                  pl.BlockSpec((1, 1, S), lambda b: (b, 0, 0))],
        out_specs=pl.BlockSpec((1, 1, H), lambda b: (b, 0, 0)),
        compiler_params=pltpu.CompilerParams(dimension_semantics=("parallel",)),
    )(x, mask_f.reshape(B, 1, S))
    return out.reshape(B, H)


# ------------------------------ parameters ----------------------------------

def init_params(key, vocab, hidden, n_layers, intermediate, max_pos):
    cnt = [0]

    def norm(shape):
        cnt[0] += 1
        return 0.02 * jax.random.normal(jax.random.fold_in(key, cnt[0]),
                                        shape, dtype=jnp.float32)

    params = dict(
        word_emb=norm((vocab, hidden)),
        pos_emb=norm((max_pos, hidden)),
        type_emb=norm((1, hidden)),
        emb_ln_g=jnp.ones((hidden,), jnp.float32),
        emb_ln_b=jnp.zeros((hidden,), jnp.float32),
        layers=[],
    )
    for _ in range(n_layers):
        params["layers"].append(dict(
            w_qkv=norm((hidden, 3 * hidden)), b_qkv=norm((3 * hidden,)),   # fused Q|K|V
            wo=norm((hidden, hidden)), bo=norm((hidden,)),
            ln1_g=jnp.ones((hidden,), jnp.float32),
            ln1_b=jnp.zeros((hidden,), jnp.float32),
            w1=norm((hidden, intermediate)), b1=norm((intermediate,)),
            w2=norm((intermediate, hidden)), b2=norm((hidden,)),
            ln2_g=jnp.ones((hidden,), jnp.float32),
            ln2_b=jnp.zeros((hidden,), jnp.float32),
        ))
    return params


# ------------------------------ forward (Pallas) -----------------------------

def unixcoder_forward(params, source_ids, n_heads):
    B, S = source_ids.shape
    H = params["word_emb"].shape[1]

    mask = source_ids != PAD_ID
    mask_f = mask.astype(jnp.float32)
    mask_i = mask.astype(jnp.int32)
    # RoBERTa position ids (padding positions stay at the pad index)
    pos_ids = jnp.cumsum(mask_i, axis=1) * mask_i + PAD_ID

    # embedding gathers stay in plain JAX (no rectangular BlockSpec for gather)
    emb = (params["word_emb"][source_ids]
           + params["pos_emb"][pos_ids]
           + params["type_emb"][0])
    x = layernorm(emb.reshape(B * S, H), params["emb_ln_g"], params["emb_ln_b"])

    for lp in params["layers"]:
        qkv = linear(x, lp["w_qkv"], lp["b_qkv"])                 # [B*S, 3H]
        ctx = attention(qkv.reshape(B, S, 3 * H), mask_f, n_heads)  # [B, S, H]
        x = linear_add_layernorm(ctx.reshape(B * S, H), lp["wo"], lp["bo"],
                                 x, lp["ln1_g"], lp["ln1_b"])
        h1 = linear(x, lp["w1"], lp["b1"], activation="gelu")
        x = linear_add_layernorm(h1, lp["w2"], lp["b2"],
                                 x, lp["ln2_g"], lp["ln2_b"])

    token_embeddings = x.reshape(B, S, H)
    sentence_embeddings = masked_mean_pool(token_embeddings, mask_f)
    return token_embeddings, sentence_embeddings


# ------------------------------ pure-JAX reference ---------------------------

def reference_forward(params, source_ids, n_heads):
    B, S = source_ids.shape
    H = params["word_emb"].shape[1]
    Dh = H // n_heads

    mask_f = (source_ids != PAD_ID).astype(jnp.float32)
    mask_i = (source_ids != PAD_ID).astype(jnp.int32)
    pos_ids = jnp.cumsum(mask_i, axis=1) * mask_i + PAD_ID

    def ln(x, g, b):
        mu = jnp.mean(x, -1, keepdims=True)
        var = jnp.mean(jnp.square(x - mu), -1, keepdims=True)
        return (x - mu) * jax.lax.rsqrt(var + EPS) * g + b

    x = (params["word_emb"][source_ids]
         + params["pos_emb"][pos_ids]
         + params["type_emb"][0])
    x = ln(x, params["emb_ln_g"], params["emb_ln_b"])

    pair = mask_f[:, None, :] * mask_f[:, :, None]
    bias = (1.0 - pair) * NEG_INF

    def heads(t):
        return t.reshape(B, S, n_heads, Dh).transpose(0, 2, 1, 3)

    for lp in params["layers"]:
        qkv = x @ lp["w_qkv"] + lp["b_qkv"]
        q, k, v = jnp.split(qkv, 3, axis=-1)
        qh, kh, vh = heads(q), heads(k), heads(v)
        s = jnp.einsum("bhqd,bhkd->bhqk", qh, kh) / (Dh ** 0.5) + bias[:, None]
        s = s - jnp.max(s, axis=-1, keepdims=True)
        p = jnp.exp(s)
        p = p / jnp.sum(p, axis=-1, keepdims=True)
        ctx = jnp.einsum("bhqk,bhkd->bhqd", p, vh).transpose(0, 2, 1, 3).reshape(B, S, H)
        x = ln(ctx @ lp["wo"] + lp["bo"] + x, lp["ln1_g"], lp["ln1_b"])
        h = jax.nn.gelu(x @ lp["w1"] + lp["b1"], approximate=True)
        x = ln(h @ lp["w2"] + lp["b2"] + x, lp["ln2_g"], lp["ln2_b"])

    tok = x
    sent = jnp.sum(tok * mask_f[..., None], axis=1) / jnp.sum(mask_f, axis=1, keepdims=True)
    return tok, sent


# ------------------------------ main ------------------------------

if __name__ == "__main__":
    B, S, H, NH, L, I, V, MAXPOS = 2, 8, 32, 4, 2, 64, 100, 40

    key = jax.random.PRNGKey(0)
    pkey, dkey = jax.random.split(key)
    params = init_params(pkey, V, H, L, I, MAXPOS)

    source_ids = jax.random.randint(dkey, (B, S), 2, V, dtype=jnp.int32)
    source_ids = source_ids.at[1, 5:].set(PAD_ID)   # some padding in row 1

    tok, sent = unixcoder_forward(params, source_ids, NH)
    jax.block_until_ready((tok, sent))

    tok_ref, sent_ref = reference_forward(params, source_ids, NH)
    assert tok.shape == (B, S, H) and sent.shape == (B, H)
    # tolerance loosened for bf16 MXU operands + approx reciprocal vs f32 reference
    assert jnp.allclose(tok, tok_ref, atol=2e-2, rtol=2e-2), float(jnp.max(jnp.abs(tok - tok_ref)))
    assert jnp.allclose(sent, sent_ref, atol=2e-2, rtol=2e-2), float(jnp.max(jnp.abs(sent - sent_ref)))

    print("KERNEL_OK")
</pallas_src>

<mosaic_0001>
module attributes {stable_mosaic.version = 11 : i64} {
  func.func @_ln_kernel(%arg0: i32, %arg1: memref<16x32xf32, #tpu.memory_space<vmem>>, %arg2: memref<1x32xf32, #tpu.memory_space<vmem>>, %arg3: memref<1x32xf32, #tpu.memory_space<vmem>>, %arg4: memref<16x32xf32, #tpu.memory_space<vmem>>) attributes {dimension_semantics = [#tpu.dimension_semantics<parallel>], iteration_bounds = array<i64: 1>, scalar_prefetch = 0 : i64, scratch_operands = 0 : i64, tpu.core_type = #tpu.core_type<tc>, window_params = [{transform_indices = @transform_0, window_bounds = array<i64: 16, 32>}, {pipeline_mode = #tpu.pipeline_mode<synchronous>, transform_indices = @transform_1, window_bounds = array<i64: 1, 32>}, {pipeline_mode = #tpu.pipeline_mode<synchronous>, transform_indices = @transform_2, window_bounds = array<i64: 1, 32>}, {transform_indices = @transform_3, window_bounds = array<i64: 16, 32>}]} {
    %c0 = arith.constant 0 : index
    %c0_0 = arith.constant 0 : index
    %0 = vector.load %arg1[%c0, %c0_0] : memref<16x32xf32, #tpu.memory_space<vmem>>, vector<16x32xf32>
    %cst = arith.constant dense<0.000000e+00> : vector<16xf32>
    %1 = vector.multi_reduction <add>, %0, %cst [1] : vector<16x32xf32> to vector<16xf32>
    %2 = vector.shape_cast %1 : vector<16xf32> to vector<16x1xf32>
    %cst_1 = arith.constant 3.200000e+01 : f32
    %3 = vector.broadcast %cst_1 : f32 to vector<16x1xf32>
    %4 = arith.divf %2, %3 : vector<16x1xf32>
    %5 = vector.broadcast %4 : vector<16x1xf32> to vector<16x32xf32>
    %6 = arith.subf %0, %5 : vector<16x32xf32>
    %7 = arith.mulf %6, %6 : vector<16x32xf32>
    %cst_2 = arith.constant dense<0.000000e+00> : vector<16xf32>
    %8 = vector.multi_reduction <add>, %7, %cst_2 [1] : vector<16x32xf32> to vector<16xf32>
    %9 = vector.shape_cast %8 : vector<16xf32> to vector<16x1xf32>
    %cst_3 = arith.constant 3.200000e+01 : f32
    %10 = vector.broadcast %cst_3 : f32 to vector<16x1xf32>
    %11 = arith.divf %9, %10 : vector<16x1xf32>
    %12 = vector.broadcast %4 : vector<16x1xf32> to vector<16x32xf32>
    %13 = arith.subf %0, %12 : vector<16x32xf32>
    %cst_4 = arith.constant 9.99999974E-6 : f32
    %14 = vector.broadcast %cst_4 : f32 to vector<16x1xf32>
    %15 = arith.addf %11, %14 : vector<16x1xf32>
    %16 = math.rsqrt %15 : vector<16x1xf32>
    %17 = vector.broadcast %16 : vector<16x1xf32> to vector<16x32xf32>
    %18 = arith.mulf %13, %17 : vector<16x32xf32>
    %c0_5 = arith.constant 0 : index
    %c0_6 = arith.constant 0 : index
    %19 = vector.load %arg2[%c0_5, %c0_6] : memref<1x32xf32, #tpu.memory_space<vmem>>, vector<1x32xf32>
    %20 = vector.broadcast %19 : vector<1x32xf32> to vector<16x32xf32>
    %21 = arith.mulf %18, %20 : vector<16x32xf32>
    %c0_7 = arith.constant 0 : index
    %c0_8 = arith.constant 0 : index
    %22 = vector.load %arg3[%c0_7, %c0_8] : memref<1x32xf32, #tpu.memory_space<vmem>>, vector<1x32xf32>
    %23 = vector.broadcast %22 : vector<1x32xf32> to vector<16x32xf32>
    %24 = arith.addf %21, %23 : vector<16x32xf32>
    %c0_9 = arith.constant 0 : index
    %c0_10 = arith.constant 0 : index
    %25 = vector.load %arg4[%c0_9, %c0_10] : memref<16x32xf32, #tpu.memory_space<vmem>>, vector<16x32xf32>
    tpu.vector_store %arg4[%c0_9, %c0_10], %24 {strides = array<i32>} : memref<16x32xf32, #tpu.memory_space<vmem>>, vector<16x32xf32>,
    return
  }
  func.func @transform_0(%arg0: i32) -> (i32, i32) {
    %c0_i32 = arith.constant 0 : i32
    %c0_i32_0 = arith.constant 0 : i32
    return %arg0, %c0_i32 : i32, i32
  }
  func.func @transform_1(%arg0: i32) -> (i32, i32) {
    %c0_i32 = arith.constant 0 : i32
    %c0_i32_0 = arith.constant 0 : i32
    %c0_i32_1 = arith.constant 0 : i32
    return %c0_i32, %c0_i32_0 : i32, i32
  }
  func.func @transform_2(%arg0: i32) -> (i32, i32) {
    %c0_i32 = arith.constant 0 : i32
    %c0_i32_0 = arith.constant 0 : i32
    %c0_i32_1 = arith.constant 0 : i32
    return %c0_i32, %c0_i32_0 : i32, i32
  }
  func.func @transform_3(%arg0: i32) -> (i32, i32) {
    %c0_i32 = arith.constant 0 : i32
    %c0_i32_0 = arith.constant 0 : i32
    return %arg0, %c0_i32 : i32, i32
  }
}

</mosaic_0001>

<llo_original>
// kernel: tpu_custom_call.1
$region0: #{tpu_custom_call.1}
  #allocation0 [shape = 'u32[]', space=smem, size = 0x4, offset = 0x4, fixed_abs, tag = 'smem constant byte address 0x4 - core index']
  #allocation1 [shape = 'u32[72,128]{1,0:T(1,128)}', space=vmem, size = 0x9000, scoped, tag = 'internal scratch']
  %s0 = inlined_call_operand.hbm [shape: f32[16,32], index: 0, kind: input, shape index: {}]
  %s1 = inlined_call_operand.hbm [shape: f32[1,32], index: 1, kind: input, shape index: {}]
  %s2 = inlined_call_operand.vmem [shape: f32[1,32], index: 2, kind: input, shape index: {}]
  %s3 = inlined_call_operand.hbm [shape: f32[16,32], index: 3, kind: output, shape index: {}]
  %s4 = sld [smem:[#allocation0]]
  $region30: #{tpu_custom_call.1} parent=0
    _
  %s6 = ssub.s32 1, %s4
  %s7 = scalar_select 0, %s6, %s4
  $region1: #{tpu_custom_call.1} parent=0
    #allocation2 [shape = 'u8[8192]{0}', space=vmem, size = 0x2000, scoped, tag = 'input window, operand 0, single buffered']
    #allocation3 [shape = 's32[1]{0}', space=sflag, size = 0x4, scoped, tag = 'scoped memory for tpu_custom_call.1']
    #allocation4 [shape = 's32[1]{0}', space=sflag, size = 0x4, scoped, tag = 'scoped memory for tpu_custom_call.1']
    #allocation5 [shape = 'u8[512]{0}', space=vmem, size = 0x400, scoped, tag = 'input window, operand 1, single buffered']
    #allocation6 [shape = 's32[1]{0}', space=sflag, size = 0x4, scoped, tag = 'scoped memory for tpu_custom_call.1']
    #allocation7 [shape = 'u8[8192]{0}', space=vmem, size = 0x2000, scoped, tag = 'output window, operand 0, single buffered']
    %8 = vsyncpa [#allocation3], 0
    %9 = vsyncpa [#allocation6], 0
    %10 = vsyncpa [#allocation4], 0
    // Predicated region
    $region2: #{tpu_custom_call.1} parent=1 // pred_check
      _
    $region3: #{tpu_custom_call.1} parent=1 // pred_check_branch
      %12 = sbr.rel (0) target = $region5
    $region4: #{tpu_custom_call.1} parent=1 // pred_region
      %14 = vsyncadd [#allocation3], 0
      %s15 = sshll.u32 %s0, 4
      %s16 = int_to_ptr.hbm [resolvable:$true] %s15
      %s17 = sshll.u32 [#allocation2], 4
      %s18 = int_to_ptr.vmem [resolvable:$true] %s17
      %23 = dma.hbm_to_vmem [thread:$0]  %s16, 256, %s18, [#allocation3], 128, 128, 8
    $region5: #{tpu_custom_call.1} parent=1 // pred_fallthru
      _
    // Predicated region
    $region6: #{tpu_custom_call.1} parent=1 // pred_check
      _
    $region7: #{tpu_custom_call.1} parent=1 // pred_check_branch
      %25 = sbr.rel (0) target = $region9
    $region8: #{tpu_custom_call.1} parent=1 // pred_region
      %27 = vsyncadd [#allocation6], 0
      %s29 = sshll.u32 %s1, 4
      %s30 = int_to_ptr.hbm [resolvable:$true] %s29
      %s31 = sshll.u32 [#allocation5], 4
      %s32 = int_to_ptr.vmem [resolvable:$true] %s31
      %34 = dma.hbm_to_vmem [thread:$0]  %s30, 16, %s32, [#allocation6]
    $region9: #{tpu_custom_call.1} parent=1 // pred_fallthru
      _
    // Predicated region
    $region10: #{tpu_custom_call.1} parent=1 // pred_check
      _
    $region11: #{tpu_custom_call.1} parent=1 // pred_check_branch
      %36 = sbr.rel (0) target = $region13
    $region12: #{tpu_custom_call.1} parent=1 // pred_region
      _
    $region13: #{tpu_custom_call.1} parent=1 // pred_fallthru
      _
    // Predicated region
    $region14: #{tpu_custom_call.1} parent=1 // pred_check
      _
    $region15: #{tpu_custom_call.1} parent=1 // pred_check_branch
      %38 = sbr.rel (0) target = $region17
    $region16: #{tpu_custom_call.1} parent=1 // pred_region
      %40 = dma.done [#allocation3], 256
    $region17: #{tpu_custom_call.1} parent=1 // pred_fallthru
      _
    // Predicated region
    $region18: #{tpu_custom_call.1} parent=1 // pred_check
      _
    $region19: #{tpu_custom_call.1} parent=1 // pred_check_branch
      %42 = sbr.rel (0) target = $region21
    $region20: #{tpu_custom_call.1} parent=1 // pred_region
      %44 = dma.done [#allocation6], 16
    $region21: #{tpu_custom_call.1} parent=1 // pred_fallthru
      _
    %v45 = vld [vmem:[#allocation2] sm:$0xff]
    %v46 = vld [vmem:[#allocation2 + $0x8] sm:$0xff]
    %vm47 = vcmask 261120
    %v48 = vsel %vm47, %v45, 0.0
    %49 = vadd.xlane.f32.xlu0 %v48
    %v50 = vpop.xlane.xlu0 %49
    %v51 = vsel %vm47, %v46, 0.0
    %52 = vadd.xlane.f32.xlu0 %v51
    %v53 = vpop.xlane.xlu0 %52
    %v54 = vrcp.pop 32.0
    %v55 = vmul.f32 32.0, %v54
    %v56 = vsub.f32 1.0, %v55
    %v57 = vmul.f32 %v54, %v56
    %v58 = vadd.f32 %v54, %v57
    %vm59 = vweird.f32 %v54
    %v60 = vsel %vm59, %v54, %v58
    %v61 = vmul.f32 %v50, %v60
    %v62 = vmul.f32 %v53, %v60
    %v63 = vsub.f32 %v45, %v61
    %v64 = vsub.f32 %v46, %v62
    %v65 = vmul.f32 %v63, %v63
    %v66 = vmul.f32 %v64, %v64
    %v67 = vsel %vm47, %v65, 0.0
    %68 = vadd.xlane.f32.xlu0 %v67
    %v69 = vpop.xlane.xlu0 %68
    %v70 = vsel %vm47, %v66, 0.0
    %71 = vadd.xlane.f32.xlu0 %v70
    %v72 = vpop.xlane.xlu0 %71
    %v73 = vmul.f32 %v69, %v60
    %v74 = vmul.f32 %v72, %v60
    %v75 = vadd.f32 %v73, 1e-05
    %v76 = vadd.f32 %v74, 1e-05
    %v77 = vrsqrt.pop %v75
    %v78 = vmul.f32 %v77, %v75
    %v79 = vmul.f32 %v78, %v77
    %v80 = vmul.f32 0.5, %v79
    %v81 = vsub.f32 1.5, %v80
    %v82 = vmul.f32 %v77, %v81
    %vm83 = vweird.f32 %v75
    %vm84 = vweird.f32 %v77
    %vm85 = vmor %vm83, %vm84
    %v86 = vsel %vm85, %v77, %v82
    %v87 = vrsqrt.pop %v76
    %v88 = vmul.f32 %v87, %v76
    %v89 = vmul.f32 %v88, %v87
    %v90 = vmul.f32 0.5, %v89
    %v91 = vsub.f32 1.5, %v90
    %v92 = vmul.f32 %v87, %v91
    %vm93 = vweird.f32 %v76
    %vm94 = vweird.f32 %v87
    %vm95 = vmor %vm93, %vm94
    %v96 = vsel %vm95, %v87, %v92
    %v97 = vmul.f32 %v63, %v86
    %v98 = vmul.f32 %v64, %v96
    %v99 = vld [vmem:[#allocation5] sm:$0x1]
    %v101 = vperm.slane %v99, 0
    %v103 = vmul.f32 %v97, %v101
    %v104 = vmul.f32 %v98, %v101
    %v105 = vld [vmem:[%s2] sm:$0x1]
    %v107 = vperm.slane %v105, 0
    %v109 = vadd.f32 %v103, %v107
    %v110 = vadd.f32 %v104, %v107
    %111 = vst.msk [vmem:[#allocation7] sm:$0xff] %vm47, %v109
    %112 = vst.msk [vmem:[#allocation7 + $0x8] sm:$0xff] %vm47, %v110
    // Predicated region
    $region22: #{tpu_custom_call.1} parent=1 // pred_check
      _
    $region23: #{tpu_custom_call.1} parent=1 // pred_check_branch
      %114 = sbr.rel (0) target = $region25
    $region24: #{tpu_custom_call.1} parent=1 // pred_region
      %116 = vsyncadd [#allocation4], 0
      %s117 = sshll.u32 [#allocation7], 4
      %s118 = int_to_ptr.vmem [resolvable:$true] %s117
      %s119 = sshll.u32 %s3, 4
      %s120 = int_to_ptr.hbm [resolvable:$true] %s119
      %125 = dma.vmem_to_hbm [thread:$0]  %s118, 256, %s120, [#allocation4], 128, 128, 8
    $region25: #{tpu_custom_call.1} parent=1 // pred_fallthru
      _
    // Predicated region
    $region26: #{tpu_custom_call.1} parent=1 // pred_check
      _
    $region27: #{tpu_custom_call.1} parent=1 // pred_check_branch
      %127 = sbr.rel (0) target = $region29
    $region28: #{tpu_custom_call.1} parent=1 // pred_region
      %129 = dma.done [#allocation4], 256
    $region29: #{tpu_custom_call.1} parent=1 // pred_fallthru
      _
    %130 = vsyncpa [#allocation3], 1
    %131 = vsyncpa [#allocation6], 1
    %132 = vsyncpa [#allocation4], 1

</llo_original>
